<compile_context>
chip_gen: v5e
topology: v5e:2x2
jax: 0.10.0
libtpu: 0.0.40
codegen_flags: <defaults>
</compile_context>

<pallas_src>
import functools

import jax
import jax.numpy as jnp
from jax.experimental import pallas as pl
from jax.experimental.pallas import tpu as pltpu


def _round_up(x: int, m: int) -> int:
    return (x + m - 1) // m * m


def _vmem_capacity_bytes() -> int:
    try:
        return int(pltpu.get_tpu_info().vmem_capacity_bytes)
    except Exception:  # older jax / non-TPU tracing: conservative (v7x per-TC)
        return 64 * 1024 * 1024


def _pick_tile(l_out, c_in, c_out, itemsize, gran, vmem_cap, max_tile_l):
    budget = int(vmem_cap * 0.4)
    # double-buffered in/out blocks + in-kernel f32 temporaries, per output lane
    per_lane = 2 * (c_in + c_out) * itemsize + (3 * c_in + c_out) * 4
    tl = max(gran, (budget // max(per_lane, 1)) // gran * gran)
    tl_cap = 2048 if vmem_cap >= (96 << 20) else 1024   # 128 MiB parts vs v7x
    tl = min(tl, _round_up(tl_cap, gran))
    if max_tile_l is not None:
        tl = min(tl, max(gran, _round_up(max_tile_l, gran)))
    tl = min(tl, _round_up(l_out, gran))
    return tl


def _pick_batch_fold(n, c_in, c_out, length, l_out, itemsize, vmem_cap):
    budget = int(vmem_cap * 0.4)
    per_b = (c_in * length + c_out * l_out) * (2 * itemsize + 4)
    cap = max(1, min(8, budget // max(per_b, 1)))
    nb = 1
    for cand in range(2, min(cap, n) + 1):
        # fold batches, but keep >= 2 grid steps so both v7x TCs get work
        if n % cand == 0 and n // cand >= 2:
            nb = cand
    return nb


# --------------------------------------------------------------------------- #
# Kernel bodies                                                               #
# --------------------------------------------------------------------------- #
def _taps_matmul(w_ref, x, k, l_out):
    """Per-tap accumulation for a tile already containing all K taps.

    x: (c_in, L_tile) with L_tile >= l_out + k - 1.  Returns f32 (c_out, l_out).
    """
    length = x.shape[1]
    use_roll = (length % 128 == 0)  # lane-aligned width -> XLU roll, no relayout
    acc = jnp.dot(w_ref[0], x[:, :l_out], preferred_element_type=jnp.float32)
    for kk in range(1, k):
        if use_roll:
            xk = pltpu.roll(x, length - kk, axis=1)[:, :l_out]
        else:
            xk = x[:, kk:kk + l_out]  # small tiles only; single-vreg shift
        acc = acc + jnp.dot(w_ref[kk], xk, preferred_element_type=jnp.float32)
    return acc


def _conv1d_small_kernel(x_ref, w_ref, o_ref, *, k, nb, l_out):
    # x_ref: (nb, c_in, L)   w_ref: (k, c_out, c_in)   o_ref: (nb, c_out, l_out)
    for b in range(nb):  # static unroll: several batches per grid step
        o_ref[b] = _taps_matmul(w_ref, x_ref[b], k, l_out).astype(o_ref.dtype)


def _conv1d_tiled_kernel(*refs, k, tl, halo_w):
    # k > 1 : refs = (x_ref, h_ref, w_ref, o_ref)
    # k == 1: refs = (x_ref, w_ref, o_ref)
    if k > 1:
        x_ref, h_ref, w_ref, o_ref = refs
    else:
        x_ref, w_ref, o_ref = refs

    x = x_ref[0]                                          # (c_in, tl)
    acc = jnp.dot(w_ref[0], x, preferred_element_type=jnp.float32)

    if k > 1:
        c_in = x.shape[0]
        halo = h_ref[0]                                   # (c_in, halo_w)
        if tl > halo_w:                                   # widen to tl lanes
            halo = jnp.concatenate(
                [halo, jnp.zeros((c_in, tl - halo_w), halo.dtype)], axis=1)
        lane = jax.lax.broadcasted_iota(jnp.int32, (1, tl), 1)
        for kk in range(1, k):
            # Column j of tap kk is global column l*tl + j + kk:
            #   j <  tl-kk -> from the main tile  (roll by -kk, XLU slot)
            #   j >= tl-kk -> from the halo tile  (its first kk columns)
            x_shift = pltpu.roll(x, tl - kk, axis=1)      # == roll(x, -kk)
            h_shift = pltpu.roll(halo, tl - kk, axis=1)
            xk = jnp.where(lane < tl - kk, x_shift, h_shift)
            acc = acc + jnp.dot(w_ref[kk], xk,
                                preferred_element_type=jnp.float32)

    o_ref[0] = acc.astype(o_ref.dtype)


# --------------------------------------------------------------------------- #
# Wrapper                                                                     #
# --------------------------------------------------------------------------- #
@functools.partial(jax.jit, static_argnames=("compute_dtype", "max_tile_l"))
def basic_conv1d(x, w, *, compute_dtype=None, max_tile_l=None):
    """VALID 1-D conv: x (N, C_in, L), w (C_out, C_in, K) -> (N, C_out, L-K+1)."""
    n, c_in, length = x.shape
    c_out, c_in_w, k = w.shape
    assert c_in == c_in_w, "in_channels mismatch between x and w"
    l_out = length - k + 1
    if l_out <= 0:
        raise ValueError(f"kernel_size={k} larger than input length={length}")

    if compute_dtype is not None:           # opt-in bf16 etc.; f32 accumulation
        x = x.astype(compute_dtype)
        w = w.astype(compute_dtype)
    out_dtype = x.dtype
    itemsize = jnp.dtype(x.dtype).itemsize

    # Taps-first weight layout: w_taps[kk] is the (C_out, C_in) matrix of tap kk.
    w_taps = jnp.transpose(w, (2, 0, 1))

    vmem_cap = _vmem_capacity_bytes()
    vmem_limit = max(32 << 20, min(int(vmem_cap * 0.7), 100 << 20))

    halo_w = _round_up(k - 1, 128) if k > 1 else 0
    gran = halo_w if halo_w else 128
    tl = _pick_tile(l_out, c_in, c_out, itemsize, gran, vmem_cap, max_tile_l)
    n_l_tiles = pl.cdiv(l_out, tl)

    if n_l_tiles == 1:
        # ---- single-tile path: whole L per block, no halo, batches folded ----
        nb = _pick_batch_fold(n, c_in, c_out, length, l_out, itemsize, vmem_cap)
        kernel = functools.partial(_conv1d_small_kernel, k=k, nb=nb, l_out=l_out)
        return pl.pallas_call(
            kernel,
            out_shape=jax.ShapeDtypeStruct((n, c_out, l_out), out_dtype),
            grid_spec=pltpu.PrefetchScalarGridSpec(
                num_scalar_prefetch=0,
                grid=(n // nb,),
                in_specs=[
                    pl.BlockSpec((nb, c_in, length), lambda i: (i, 0, 0)),
                    pl.BlockSpec((k, c_out, c_in), lambda i: (0, 0, 0)),
                ],
                out_specs=pl.BlockSpec((nb, c_out, l_out), lambda i: (i, 0, 0)),
            ),
            compiler_params=pltpu.CompilerParams(
                dimension_semantics=("parallel",),
                vmem_limit_bytes=vmem_limit,
            ),
        )(x, w_taps)

    # ---- tiled path: L tiled (128-multiple), halo via a 2nd blocked view ------
    hmax = (length - 1) // gran          # last in-bounds halo block (clamp)
    tpg = tl // gran                     # tile length in halo granules
    kernel = functools.partial(_conv1d_tiled_kernel, k=k, tl=tl, halo_w=halo_w)

    in_specs = [pl.BlockSpec((1, c_in, tl), lambda b, l: (b, 0, l))]
    args = [x]
    if k > 1:
        in_specs.append(
            pl.BlockSpec(
                (1, c_in, halo_w),
                lambda b, l: (b, 0, jnp.minimum((l + 1) * tpg, hmax)),
            ))
        args.append(x)                   # same array: next-tile halo view
    in_specs.append(pl.BlockSpec((k, c_out, c_in), lambda b, l: (0, 0, 0)))
    args.append(w_taps)

    return pl.pallas_call(
        kernel,
        out_shape=jax.ShapeDtypeStruct((n, c_out, l_out), out_dtype),
        grid_spec=pltpu.PrefetchScalarGridSpec(
            num_scalar_prefetch=0,
            grid=(n, n_l_tiles),
            in_specs=in_specs,
            out_specs=pl.BlockSpec((1, c_out, tl), lambda b, l: (b, 0, l)),
        ),
        compiler_params=pltpu.CompilerParams(
            dimension_semantics=("parallel", "parallel"),
            vmem_limit_bytes=vmem_limit,
        ),
    )(*args)


if __name__ == "__main__":
    key = jax.random.PRNGKey(0)
    kx, kw, kx2, kw2 = jax.random.split(key, 4)

    # BasicConv1d(in_channels=4, out_channels=8, kernel_size=3) -- small path.
    N, C_IN, C_OUT, L, K = 2, 4, 8, 16, 3
    x = jax.random.normal(kx, (N, C_IN, L), dtype=jnp.float32)
    w = jax.random.normal(kw, (C_OUT, C_IN, K), dtype=jnp.float32) * 0.1

    out = basic_conv1d(x, w)
    jax.block_until_ready(out)
    ref = jax.lax.conv_general_dilated(
        x, w, window_strides=(1,), padding="VALID",
        dimension_numbers=("NCH", "OIH", "NCH"))
    assert out.shape == (N, C_OUT, L - K + 1)
    assert jnp.allclose(out, ref, atol=1e-5, rtol=1e-5)

    # Longer sequence with a forced small tile -- exercises the tiled/halo path.
    N2, C2_IN, C2_OUT, L2, K2 = 2, 4, 8, 300, 5
    x2 = jax.random.normal(kx2, (N2, C2_IN, L2), dtype=jnp.float32)
    w2 = jax.random.normal(kw2, (C2_OUT, C2_IN, K2), dtype=jnp.float32) * 0.1

    out2 = basic_conv1d(x2, w2, max_tile_l=128)
    jax.block_until_ready(out2)
    ref2 = jax.lax.conv_general_dilated(
        x2, w2, window_strides=(1,), padding="VALID",
        dimension_numbers=("NCH", "OIH", "NCH"))
    assert out2.shape == (N2, C2_OUT, L2 - K2 + 1)
    assert jnp.allclose(out2, ref2, atol=1e-5, rtol=1e-5)

    print("KERNEL_OK")
</pallas_src>

<mosaic_0001>
module attributes {stable_mosaic.version = 11 : i64} {
  func.func @_conv1d_small_kernel(%arg0: i32, %arg1: memref<1x4x16xf32, #tpu.memory_space<vmem>>, %arg2: memref<3x8x4xf32, #tpu.memory_space<vmem>>, %arg3: memref<1x8x14xf32, #tpu.memory_space<vmem>>) attributes {dimension_semantics = [#tpu.dimension_semantics<parallel>], iteration_bounds = array<i64: 2>, scalar_prefetch = 0 : i64, scratch_operands = 0 : i64, tpu.core_type = #tpu.core_type<tc>, window_params = [{transform_indices = @transform_0, window_bounds = array<i64: 1, 4, 16>}, {pipeline_mode = #tpu.pipeline_mode<synchronous>, transform_indices = @transform_1, window_bounds = array<i64: 3, 8, 4>}, {transform_indices = @transform_2, window_bounds = array<i64: 1, 8, 14>}]} {
    %c0 = arith.constant 0 : index
    %c0_0 = arith.constant 0 : index
    %c0_1 = arith.constant 0 : index
    %0 = vector.load %arg1[%c0, %c0_0, %c0_1] : memref<1x4x16xf32, #tpu.memory_space<vmem>>, vector<1x4x16xf32>
    %1 = vector.shape_cast %0 : vector<1x4x16xf32> to vector<4x16xf32>
    %c0_2 = arith.constant 0 : index
    %c0_3 = arith.constant 0 : index
    %c0_4 = arith.constant 0 : index
    %2 = vector.load %arg2[%c0_2, %c0_3, %c0_4] : memref<3x8x4xf32, #tpu.memory_space<vmem>>, vector<1x8x4xf32>
    %3 = vector.shape_cast %2 : vector<1x8x4xf32> to vector<8x4xf32>
    %4 = vector.extract_strided_slice %1 {offsets = [0, 0], sizes = [4, 14], strides = [1, 1]} : vector<4x16xf32> to vector<4x14xf32>
    %cst = arith.constant dense<0.000000e+00> : vector<8x14xf32>
    %5 = tpu.matmul %3, %4, %cst {dimension_numbers = #tpu.dot_dimension_numbers<[1], [0], [0], [1], [0, 0, 1, 1], [], []>} : vector<8x4xf32>, vector<4x14xf32>, vector<8x14xf32> -> vector<8x14xf32>
    %6 = vector.extract_strided_slice %1 {offsets = [0, 1], sizes = [4, 14], strides = [1, 1]} : vector<4x16xf32> to vector<4x14xf32>
    %c1 = arith.constant 1 : index
    %c0_5 = arith.constant 0 : index
    %c0_6 = arith.constant 0 : index
    %7 = vector.load %arg2[%c1, %c0_5, %c0_6] : memref<3x8x4xf32, #tpu.memory_space<vmem>>, vector<1x8x4xf32>
    %8 = vector.shape_cast %7 : vector<1x8x4xf32> to vector<8x4xf32>
    %cst_7 = arith.constant dense<0.000000e+00> : vector<8x14xf32>
    %9 = tpu.matmul %8, %6, %cst_7 {dimension_numbers = #tpu.dot_dimension_numbers<[1], [0], [0], [1], [0, 0, 1, 1], [], []>} : vector<8x4xf32>, vector<4x14xf32>, vector<8x14xf32> -> vector<8x14xf32>
    %10 = arith.addf %5, %9 : vector<8x14xf32>
    %11 = vector.extract_strided_slice %1 {offsets = [0, 2], sizes = [4, 14], strides = [1, 1]} : vector<4x16xf32> to vector<4x14xf32>
    %c2 = arith.constant 2 : index
    %c0_8 = arith.constant 0 : index
    %c0_9 = arith.constant 0 : index
    %12 = vector.load %arg2[%c2, %c0_8, %c0_9] : memref<3x8x4xf32, #tpu.memory_space<vmem>>, vector<1x8x4xf32>
    %13 = vector.shape_cast %12 : vector<1x8x4xf32> to vector<8x4xf32>
    %cst_10 = arith.constant dense<0.000000e+00> : vector<8x14xf32>
    %14 = tpu.matmul %13, %11, %cst_10 {dimension_numbers = #tpu.dot_dimension_numbers<[1], [0], [0], [1], [0, 0, 1, 1], [], []>} : vector<8x4xf32>, vector<4x14xf32>, vector<8x14xf32> -> vector<8x14xf32>
    %15 = arith.addf %10, %14 : vector<8x14xf32>
    %c0_11 = arith.constant 0 : index
    %c0_12 = arith.constant 0 : index
    %c0_13 = arith.constant 0 : index
    %16 = vector.load %arg3[%c0_11, %c0_12, %c0_13] : memref<1x8x14xf32, #tpu.memory_space<vmem>>, vector<1x8x14xf32>
    %17 = vector.shape_cast %16 : vector<1x8x14xf32> to vector<8x14xf32>
    %18 = vector.shape_cast %15 : vector<8x14xf32> to vector<1x8x14xf32>
    tpu.vector_store %arg3[%c0_11, %c0_12, %c0_13], %18 {strides = array<i32>} : memref<1x8x14xf32, #tpu.memory_space<vmem>>, vector<1x8x14xf32>,
    return
  }
  func.func @transform_0(%arg0: i32) -> (i32, i32, i32) {
    %c0_i32 = arith.constant 0 : i32
    %c0_i32_0 = arith.constant 0 : i32
    %c0_i32_1 = arith.constant 0 : i32
    return %arg0, %c0_i32, %c0_i32_0 : i32, i32, i32
  }
  func.func @transform_1(%arg0: i32) -> (i32, i32, i32) {
    %c0_i32 = arith.constant 0 : i32
    %c0_i32_0 = arith.constant 0 : i32
    %c0_i32_1 = arith.constant 0 : i32
    %c0_i32_2 = arith.constant 0 : i32
    return %c0_i32, %c0_i32_0, %c0_i32_1 : i32, i32, i32
  }
  func.func @transform_2(%arg0: i32) -> (i32, i32, i32) {
    %c0_i32 = arith.constant 0 : i32
    %c0_i32_0 = arith.constant 0 : i32
    %c0_i32_1 = arith.constant 0 : i32
    return %arg0, %c0_i32, %c0_i32_0 : i32, i32, i32
  }
}

</mosaic_0001>

<llo_original>
// kernel: basic_conv1d.1
$region0: #{basic_conv1d.1}
  #allocation0 [shape = 'u32[]', space=smem, size = 0x4, offset = 0x4, fixed_abs, tag = 'smem constant byte address 0x4 - core index']
  #allocation1 [shape = 'u32[72,128]{1,0:T(1,128)}', space=vmem, size = 0x9000, scoped, tag = 'internal scratch']
  %s0 = inlined_call_operand.vmem [shape: f32[2,4,16], index: 0, kind: input, shape index: {}]
  %s1 = inlined_call_operand.vmem [shape: f32[3,8,4], index: 1, kind: input, shape index: {}]
  %s2 = inlined_call_operand.hbm [shape: f32[2,8,14], index: 2, kind: output, shape index: {}]
  %s3 = sld [smem:[#allocation0]]
  $region41: #{basic_conv1d.1} parent=0
    _
  %s5 = ssub.s32 1, %s3
  %s6 = scalar_select 0, %s5, %s3
  $region1: #{basic_conv1d.1} parent=0
    #allocation2 [shape = 'u8[8192]{0}', space=vmem, size = 0x2000, scoped, tag = 'output window, operand 0']
    #allocation3 [shape = 's32[2]{0}', space=sflag, size = 0x8, scoped, tag = 'scoped memory for basic_conv1d.1']
    %7 = vsyncpa [#allocation3], 0
    %s8 = scalar_lea.sflag [#allocation3], 1
    %9 = vsyncpa %s8, 0
    loop: start=0, step=1, limit=4
    $region2: #{basic_conv1d.1} parent=1 // loop_pre_header
      _
    $region3: #{basic_conv1d.1} parent=1 // loop_header
      %s11 = sphi 0, %s15
      %p12 = scmp.ge.s32.totalorder %s11, 4
      %s21 = sphi 0, %s23
      %s24 = sphi 0, %s21
      %s25 = sphi 0, %s24
      %s41 = sphi 0, %s25
      %s45 = sphi 0, %s45
      %s47 = sphi 0, %s45
      %s48 = sphi 0, %s47
      %s62 = sphi 0, %s48
      %s68 = sphi 0, %s70
      %s71 = sphi 0, %s68
      %s72 = sphi 0, %s71
      %s88 = sphi 0, %s72
    $region4: #{basic_conv1d.1} parent=1 // loop_header_branch
      %14 = sbr.rel (%p12) target = $region8
    $region5: #{basic_conv1d.1} parent=1 // loop_body
      %s16 = ssub.s32 %s11, 1
      %s17 = ssub.s32 %s11, 2
      %s18 = sadd.s32 %s11, 1
      %s19 = ssub.s32 %s11, %s18
      %p20 = scmp.eq.s32.totalorder %s19, 0
      %s22 = sadd.s32 %s21, 1
      %s23 = scalar_select %p20, %s21, %s22
      %p26 = pneg %p20
      %p27 = scmp.eq.s32.totalorder %s11, 1
      %p28 = por %p26, %p27
      %p29 = scmp.ne.s32.totalorder %s21, %s24
      %p30 = scmp.eq.s32.totalorder %s11, 0
      %p31 = por %p29, %p30
      %p32 = scmp.ne.s32.totalorder %s21, %s24
      %p33 = scmp.eq.s32.totalorder %s16, 1
      %p34 = por %p32, %p33
      %p35 = scmp.ne.s32.totalorder %s24, %s25
      %p36 = scmp.eq.s32.totalorder %s16, 0
      %p37 = por %p35, %p36
      %p38 = scmp.ne.s32.totalorder %s24, %s25
      %p39 = scmp.eq.s32.totalorder %s17, 1
      %p40 = por %p38, %p39
      %p42 = scmp.ne.s32.totalorder %s25, %s41
      %p43 = scmp.eq.s32.totalorder %s17, 0
      %p44 = por %p42, %p43
      %s46 = sadd.s32 %s45, 1
      %p49 = scmp.eq.s32.totalorder %s11, 1
      %p50 = scmp.ne.s32.totalorder %s45, %s47
      %p51 = scmp.eq.s32.totalorder %s11, 0
      %p52 = por %p50, %p51
      %p53 = scmp.ne.s32.totalorder %s45, %s47
      %p54 = scmp.eq.s32.totalorder %s16, 1
      %p55 = por %p53, %p54
      %p56 = scmp.ne.s32.totalorder %s47, %s48
      %p57 = scmp.eq.s32.totalorder %s16, 0
      %p58 = por %p56, %p57
      %p59 = scmp.ne.s32.totalorder %s47, %s48
      %p60 = scmp.eq.s32.totalorder %s17, 1
      %p61 = por %p59, %p60
      %p63 = scmp.ne.s32.totalorder %s48, %s62
      %p64 = scmp.eq.s32.totalorder %s17, 0
      %p65 = por %p63, %p64
      %s66 = ssub.s32 %s11, %s18
      %p67 = scmp.eq.s32.totalorder %s66, 0
      %s69 = sadd.s32 %s68, 1
      %s70 = scalar_select %p67, %s68, %s69
      %p73 = pneg %p67
      %p74 = scmp.eq.s32.totalorder %s11, 1
      %p75 = por %p73, %p74
      %p76 = scmp.ne.s32.totalorder %s68, %s71
      %p77 = scmp.eq.s32.totalorder %s11, 0
      %p78 = por %p76, %p77
      %p79 = scmp.ne.s32.totalorder %s68, %s71
      %p80 = scmp.eq.s32.totalorder %s16, 1
      %p81 = por %p79, %p80
      %p82 = scmp.ne.s32.totalorder %s71, %s72
      %p83 = scmp.eq.s32.totalorder %s16, 0
      %p84 = por %p82, %p83
      %p85 = scmp.ne.s32.totalorder %s71, %s72
      %p86 = scmp.eq.s32.totalorder %s17, 1
      %p87 = por %p85, %p86
      %p89 = scmp.ne.s32.totalorder %s72, %s88
      %p90 = scmp.eq.s32.totalorder %s17, 0
      %p91 = por %p89, %p90
      %p92 = scmp.le.s32.totalorder 1, %s11
      %p93 = scmp.lt.s32.totalorder %s11, 3
      %p94 = pnand %p92, %p93
      %p95 = pneg %p94
      // Predicated region
      $region9: #{basic_conv1d.1} parent=5 // pred_check
        _
      $region10: #{basic_conv1d.1} parent=5 // pred_check_branch
        %97 = sbr.rel (%p94) target = $region12
      $region11: #{basic_conv1d.1} parent=5 // pred_region
        %s98 = ssub.s32 %s11, 1
        // Predicated region
        $region13: #{basic_conv1d.1} parent=11 // pred_check
          %p99 = pneg %p58
        $region14: #{basic_conv1d.1} parent=11 // pred_check_branch
          %101 = sbr.rel (%p99) target = $region16
        $region15: #{basic_conv1d.1} parent=11 // pred_region
          _
        $region16: #{basic_conv1d.1} parent=11 // pred_fallthru
          _
      $region12: #{basic_conv1d.1} parent=5 // pred_fallthru
        _
      %p102 = scmp.lt.s32.totalorder %s11, 2
      // Predicated region
      $region17: #{basic_conv1d.1} parent=5 // pred_check
        %p103 = pneg %p102
      $region18: #{basic_conv1d.1} parent=5 // pred_check_branch
        %105 = sbr.rel (%p103) target = $region20
      $region19: #{basic_conv1d.1} parent=5 // pred_region
        // Predicated region
        $region21: #{basic_conv1d.1} parent=19 // pred_check
          %p106 = pneg %p31
        $region22: #{basic_conv1d.1} parent=19 // pred_check_branch
          %108 = sbr.rel (%p106) target = $region24
        $region23: #{basic_conv1d.1} parent=19 // pred_region
          %p109 = scmp.lt.s32.totalorder %s11, 1
          %s110 = scalar_select %p109, %s11, 1
          %s111 = smul.addr %s110, 4
          %s112 = scalar_lea.vmem %s0, %s111
        $region24: #{basic_conv1d.1} parent=19 // pred_fallthru
          _
      $region20: #{basic_conv1d.1} parent=5 // pred_fallthru
        _
      %p113 = scmp.le.s32.totalorder 1, %s11
      %p114 = scmp.lt.s32.totalorder %s11, 3
      %p115 = pnand %p113, %p114
      %p116 = pneg %p115
      // Predicated region
      $region25: #{basic_conv1d.1} parent=5 // pred_check
        _
      $region26: #{basic_conv1d.1} parent=5 // pred_check_branch
        %118 = sbr.rel (%p115) target = $region28
      $region27: #{basic_conv1d.1} parent=5 // pred_region
        %s119 = ssub.s32 %s11, 1
        %p120 = scmp.lt.s32.totalorder %s16, 1
        %s121 = scalar_select %p120, %s16, 1
        %s122 = smul.addr %s121, 4
        %s123 = scalar_lea.vmem %s0, %s122
        %p124 = pneg %p37
        %p125 = pneg %p34
        %p126 = pneg %p58
        %p127 = pneg %p55
        %p128 = pneg %p84
        %p129 = pneg %p81
        %s130 = sand.u32 %s71, 1
        %s131 = scalar_lea.sflag [#allocation3], %s130
        %s132 = sand.u32 %s71, 1
        %s133 = smul.addr %s132, 8
        %s134 = scalar_lea.vmem [#allocation2], %s133
        %p135 = scmp.lt.s32.totalorder %s16, 1
        %s136 = scalar_select %p135, %s16, 1
        %s137 = smul.addr %s136, 4
        %s138 = scalar_lea.vmem %s0, %s137
        %v139 = vld [vmem:[%s138] sm:$0xf]
        %v140 = vld [vmem:[%s1] sm:$0xff]
        %s141 = scalar_lea.vmem %s1, 8
        %v142 = vld [vmem:[%s141] sm:$0xff]
        %144 = vrot.lane.b32.xlu0 %v139, 127
        %v145 = vpop.permute.xlu0 %144
        %vm146 = vcmask 31744
        %v148 = vsel %vm146, %v142, 0
        %vm150 = vcmask 1043456
        %v151 = vsel %vm150, %v145, 0
        %153 = vmatpush.msra.mxu0 0.0
        %154 = vmatpush.msra.mxu0 0.0
        %155 = vmatpush.msra.mxu0 0.0
        %156 = vmatpush.msra.mxu0 0.0
        %157 = vmatpush.msra.mxu0 0.0
        %158 = vmatpush.msra.mxu0 0.0
        %159 = vmatpush.msra.mxu0 0.0
        %160 = vmatpush.msra.mxu0 0.0
        %161 = vmatpush.msra.mxu0 0.0
        %162 = vmatpush.msra.mxu0 0.0
        %163 = vmatpush.msra.mxu0 0.0
        %164 = vmatpush.msra.mxu0 0.0
        %165 = vmatpush.msra.mxu0 0.0
        %166 = vmatpush.msra.mxu0 0.0
        %167 = vmatpush.msra.mxu0 0.0
        %168 = vmatpush.msra.mxu0 %v151
        %169 = vmatmul.f32.gmra.mxu0 %v148
        %v170 = vpop.f32.mrf.mxu0
        %v171 = vadd.f32 0.0, %v170
        %172 = vdwg.mxu0
        %v174 = vsel %vm146, %v140, 0
        %v176 = vsel %vm150, %v139, 0
        %178 = vmatpush.msra.mxu0 0.0
        %179 = vmatpush.msra.mxu0 0.0
        %180 = vmatpush.msra.mxu0 0.0
        %181 = vmatpush.msra.mxu0 0.0
        %182 = vmatpush.msra.mxu0 0.0
        %183 = vmatpush.msra.mxu0 0.0
        %184 = vmatpush.msra.mxu0 0.0
        %185 = vmatpush.msra.mxu0 0.0
        %186 = vmatpush.msra.mxu0 0.0
        %187 = vmatpush.msra.mxu0 0.0
        %188 = vmatpush.msra.mxu0 0.0
        %189 = vmatpush.msra.mxu0 0.0
        %190 = vmatpush.msra.mxu0 0.0
        %191 = vmatpush.msra.mxu0 0.0
        %192 = vmatpush.msra.mxu0 0.0
        %193 = vmatpush.msra.mxu0 %v176
        %194 = vmatmul.f32.gmra.mxu0 %v174
        %v195 = vpop.f32.mrf.mxu0
        %v196 = vadd.f32 %v171, %v195
        %197 = vdwg.mxu0
        %s198 = scalar_lea.vmem %s1, 16
        %v199 = vld [vmem:[%s198] sm:$0xff]
        %200 = vrot.lane.b32.xlu0 %v139, 126
        %v201 = vpop.permute.xlu0 %200
        %v203 = vsel %vm146, %v199, 0
        %v205 = vsel %vm150, %v201, 0
        %207 = vmatpush.msra.mxu0 0.0
        %208 = vmatpush.msra.mxu0 0.0
        %209 = vmatpush.msra.mxu0 0.0
        %210 = vmatpush.msra.mxu0 0.0
        %211 = vmatpush.msra.mxu0 0.0
        %212 = vmatpush.msra.mxu0 0.0
        %213 = vmatpush.msra.mxu0 0.0
        %214 = vmatpush.msra.mxu0 0.0
        %215 = vmatpush.msra.mxu0 0.0
        %216 = vmatpush.msra.mxu0 0.0
        %217 = vmatpush.msra.mxu0 0.0
        %218 = vmatpush.msra.mxu0 0.0
        %219 = vmatpush.msra.mxu0 0.0
        %220 = vmatpush.msra.mxu0 0.0
        %221 = vmatpush.msra.mxu0 0.0
        %222 = vmatpush.msra.mxu0 %v205
        %223 = vmatmul.f32.gmra.mxu0 %v203
        %v224 = vpop.f32.mrf.mxu0
        %v225 = vadd.f32 0.0, %v224
        %226 = vdwg.mxu0
        %v227 = vadd.f32 %v196, %v225
        %vm228 = vcmask 113664
        %229 = vst.msk [vmem:[%s134] sm:$0xff] %vm228, %v227
        %s230 = sand.u32 %s71, 1
        %s231 = scalar_lea.sflag [#allocation3], %s230
        %s232 = sand.u32 %s71, 1
        %s233 = smul.addr %s232, 8
        %s234 = scalar_lea.vmem [#allocation2], %s233
        // Predicated region
        $region29: #{basic_conv1d.1} parent=27 // pred_check
          %p235 = pneg %p81
        $region30: #{basic_conv1d.1} parent=27 // pred_check_branch
          %237 = sbr.rel (%p235) target = $region32
        $region31: #{basic_conv1d.1} parent=27 // pred_region
          %239 = vsyncadd %s231, 0
          %s240 = smul.addr %s16, 8
          %s241 = scalar_lea.hbm %s2, %s240
          %s243 = sshll.u32 %s234, 4
          %s244 = int_to_ptr.vmem [resolvable:$true] %s243
          %s245 = sshll.u32 %s241, 4
          %s246 = int_to_ptr.hbm [resolvable:$true] %s245
          %248 = dma.vmem_to_hbm [thread:$0]  %s244, 128, %s246, %s231
        $region32: #{basic_conv1d.1} parent=27 // pred_fallthru
          _
      $region28: #{basic_conv1d.1} parent=5 // pred_fallthru
        _
      %p249 = scmp.le.s32.totalorder 2, %s11
      // Predicated region
      $region33: #{basic_conv1d.1} parent=5 // pred_check
        %p250 = pneg %p249
      $region34: #{basic_conv1d.1} parent=5 // pred_check_branch
        %252 = sbr.rel (%p250) target = $region36
      $region35: #{basic_conv1d.1} parent=5 // pred_region
        %s253 = ssub.s32 %s11, 2
        // Predicated region
        $region37: #{basic_conv1d.1} parent=35 // pred_check
          %p254 = pneg %p87
        $region38: #{basic_conv1d.1} parent=35 // pred_check_branch
          %256 = sbr.rel (%p254) target = $region40
        $region39: #{basic_conv1d.1} parent=35 // pred_region
          %s257 = sand.u32 %s72, 1
          %s258 = scalar_lea.sflag [#allocation3], %s257
          %s259 = sand.u32 %s72, 1
          %s260 = smul.addr %s259, 8
          %s261 = scalar_lea.vmem [#allocation2], %s260
          %263 = dma.done %s258, 128
        $region40: #{basic_conv1d.1} parent=35 // pred_fallthru
          _
      $region36: #{basic_conv1d.1} parent=5 // pred_fallthru
        _
    $region6: #{basic_conv1d.1} parent=1 // loop_footer
      %s15 = sadd.s32 1, %s11
    $region7: #{basic_conv1d.1} parent=1 // loop_footer_branch
      %10 = sbr.rel target = $region3
    $region8: #{basic_conv1d.1} parent=1 // loop_exit
      _
    %264 = vsyncpa [#allocation3], 1
    %s265 = scalar_lea.sflag [#allocation3], 1
    %266 = vsyncpa %s265, 1

</llo_original>
